<compile_context>
chip_gen: v6e
topology: v6e:2x2x1
jax: 0.10.0
libtpu: 0.0.40
codegen_flags: <defaults>
</compile_context>

<pallas_src>
import jax
import jax.numpy as jnp
from jax.experimental import pallas as pl
from jax.experimental.pallas import tpu as pltpu


def _round_up(x, m):
    return (x + m - 1) // m * m


def _vmem_capacity():
    try:
        return int(pltpu.get_tpu_info().vmem_capacity_bytes)
    except Exception:
        return 64 << 20  # conservative: v7x has 64 MiB per TensorCore


def _single_buffered_spec(block_shape, index_map):
    """Constant-index block: single-buffer it when this JAX exposes pipeline_mode."""
    try:
        return pl.BlockSpec(block_shape, index_map, pipeline_mode=pl.Buffered(1))
    except Exception:  # older pallas without pipeline_mode/Buffered
        return pl.BlockSpec(block_shape, index_map)


def _pick_tiles(B, HWp, Kp, itemsize, vmem_cap):
    """Tile sizes sized to the per-generation VMEM budget (x block double-buffered)."""
    usable = (vmem_cap * 3) // 4
    pair_budget = max(8 << 20, usable // 3)     # budget for the double-buffered x tile
    # Spatial chunk: largest multiple of 128 dividing HWp (chunks never straddle
    # channel boundaries), capped at 16384 lanes.
    g = HWp // 128
    cap = min(g, 128)
    groups = 1
    for d in range(cap, 0, -1):
        if g % d == 0:
            groups = d
            break
    thw = groups * 128
    # Batch-tile rows within the budget (x double-buffer + f32 scratch/IO per row).
    row_bytes = 2 * thw * itemsize + (128 + 6 * Kp) * 4
    tb = max(1, pair_budget // row_bytes)
    if tb >= B:
        tb = B                                   # single tile: full-dim block is always legal
    else:
        sub = max(8, 32 // itemsize)             # packed sublane tile: 8 f32 / 16 bf16 / 32 int8
        tb = max(sub, (tb // sub) * sub)
    return int(tb), int(thw)


def _make_iod_kernel(B, K, C, nhw, TB, use_mxu, compute_loss):
    """GAP (VALU lane-group adds for f32, MXU ones-dot otherwise) -> per-channel
    rank-1 head fold -> optional masked per-tile MSE partial."""

    def kernel(*refs):
        it = iter(refs)
        x_ref = next(it)                  # (TB, THW) image chunk, native dtype
        w_ref = next(it)                  # (1, 1, Kp) scaled head-weight row for channel c
        bias_ref = next(it)               # (1, Kp)
        ones_ref = next(it) if use_mxu else None
        tgt_ref = next(it) if compute_loss else None
        pred_ref = next(it)               # (TB, Kp)
        loss_ref = next(it) if compute_loss else None   # (1, 8, 128) per-tile partial
        acc_ref = next(it)                # (TB, 128) f32 GAP accumulator
        logits_ref = next(it)             # (TB, Kp) f32 logits accumulator

        i = pl.program_id(0)              # batch-tile index   ("parallel")
        c = pl.program_id(1)              # channel index      ("arbitrary")
        j = pl.program_id(2)              # spatial-chunk index("arbitrary", innermost)

        @pl.when(j == 0)
        def _init_acc():
            acc_ref[...] = jnp.zeros_like(acc_ref)

        @pl.when((c == 0) & (j == 0))
        def _init_logits():
            logits_ref[...] = jnp.zeros_like(logits_ref)

        # ---- GAP partial sums for this (batch tile, channel, chunk) ----------
        x = x_ref[...]
        if use_mxu:
            # bf16/f16: MXU ones-dot, ones is a resident single-buffered constant.
            acc_ref[...] += jnp.dot(x, ones_ref[...],
                                    preferred_element_type=jnp.float32)
        else:
            # f32: VALU lane-group adds (1 add/element), stays off the MXU.
            n_groups = x.shape[1] // 128
            part = x[:, 0:128].astype(jnp.float32)
            for g in range(1, n_groups):
                part = part + x[:, g * 128:(g + 1) * 128].astype(jnp.float32)
            acc_ref[...] += part

        # ---- fold this channel into the logits accumulator -------------------
        @pl.when(j == nhw - 1)
        def _fold_channel():
            if use_mxu:
                rs = acc_ref[:, 0:1]                       # every lane holds the row sum
            else:
                rs = jnp.sum(acc_ref[...], axis=-1, keepdims=True)  # XLU lane reduce
            # (TB,1) * (1,Kp) rank-1 update; 1/HW is pre-baked into w.
            logits_ref[...] += rs * w_ref[0]

        # ---- finalize the batch tile after the last channel -------------------
        @pl.when((j == nhw - 1) & (c == C - 1))
        def _finalize_tile():
            logits = logits_ref[...] + bias_ref[...]
            pred_ref[...] = logits.astype(pred_ref.dtype)
            if compute_loss:
                diff = logits - tgt_ref[...]
                rows = jax.lax.broadcasted_iota(jnp.int32, diff.shape, 0) + i * TB
                cols = jax.lax.broadcasted_iota(jnp.int32, diff.shape, 1)
                valid = (rows < B) & (cols < K)            # mask batch/K padding rows
                sq = jnp.where(valid, diff * diff, 0.0)
                # Per-tile partial (replicated across the lane-dense block); the
                # wrapper does the final sum * 1/(B*K), so the batch axis stays
                # "parallel" (megacore) even on the loss path.
                loss_ref[...] = jnp.zeros_like(loss_ref) + jnp.sum(sq)

    return kernel


def iod_forward(patterns, w, b, targets=None):
    """IODModel.forward: (patterns, targets=None) -> (predictions, losses)."""
    B, C, H, W = patterns.shape
    K = w.shape[1]
    HW = H * W
    itemsize = patterns.dtype.itemsize
    use_mxu = (itemsize < 4) and jnp.issubdtype(patterns.dtype, jnp.floating)

    # ---- image slab: (B, C, H, W) -> (B, C*HWp), free reshape in the aligned case.
    if HW % 128 == 0:
        HWp = HW
        x2 = patterns.reshape(B, C * HW)
    else:
        # Rare ragged-HW fallback: lane-pad the spatial dim (zero padding is
        # GAP-sum-neutral).  Costs one extra HBM pass only in this case.
        HWp = _round_up(HW, 128)
        x2 = jnp.pad(patterns.reshape(B, C, HW),
                     ((0, 0), (0, 0), (0, HWp - HW))).reshape(B, C * HWp)

    Kp = _round_up(K, 128)                       # lane-dense prediction/logits width
    vmem_cap = _vmem_capacity()
    TB, THW = _pick_tiles(B, HWp, Kp, itemsize, vmem_cap)
    nb = -(-B // TB)
    nhw = HWp // THW
    Bp = nb * TB

    # ---- head parameters: 1/HW pre-baked, lane-padded to Kp --------------------
    w_scaled = (jnp.zeros((C, 1, Kp), jnp.float32)
                .at[:, 0, :K].set(w.astype(jnp.float32) * (1.0 / HW)))
    b_pad = jnp.zeros((1, Kp), jnp.float32).at[:, :K].set(
        jnp.reshape(b, (1, K)).astype(jnp.float32))

    compute_loss = targets is not None
    kernel = _make_iod_kernel(B, K, C, nhw, TB, use_mxu, compute_loss)

    in_specs = [
        pl.BlockSpec((TB, THW), lambda i, c, j: (i, c * nhw + j)),      # image chunk
        pl.BlockSpec((1, 1, Kp), lambda i, c, j: (c, 0, 0)),            # head weight row c
        _single_buffered_spec((1, Kp), lambda i, c, j: (0, 0)),         # bias (constant)
    ]
    args = [x2, w_scaled, b_pad]

    if use_mxu:
        ones = jnp.ones((THW, 128), patterns.dtype)
        in_specs.append(_single_buffered_spec((THW, 128), lambda i, c, j: (0, 0)))
        args.append(ones)

    if compute_loss:
        t_pad = jnp.zeros((Bp, Kp), jnp.float32).at[:B, :K].set(
            targets.astype(jnp.float32))
        in_specs.append(pl.BlockSpec((TB, Kp), lambda i, c, j: (i, 0)))
        args.append(t_pad)

    if compute_loss:
        out_shape = (jax.ShapeDtypeStruct((Bp, Kp), jnp.float32),
                     jax.ShapeDtypeStruct((nb, 8, 128), jnp.float32))
        out_specs = (pl.BlockSpec((TB, Kp), lambda i, c, j: (i, 0)),
                     pl.BlockSpec((1, 8, 128), lambda i, c, j: (i, 0, 0)))
    else:
        out_shape = jax.ShapeDtypeStruct((Bp, Kp), jnp.float32)
        out_specs = pl.BlockSpec((TB, Kp), lambda i, c, j: (i, 0))

    scratch = [pltpu.VMEM((TB, 128), jnp.float32),   # GAP accumulator
               pltpu.VMEM((TB, Kp), jnp.float32)]    # logits accumulator

    # VMEM limit from the actual footprint (x double-buffered, constants ~single).
    usable = (vmem_cap * 3) // 4
    x_bytes = 2 * TB * THW * itemsize
    const_bytes = (C * Kp + 2 * Kp) * 4 + (2 * THW * 128 * itemsize if use_mxu else 0)
    scr_bytes = TB * (128 + Kp) * 4
    io_bytes = (2 + (2 if compute_loss else 0)) * TB * Kp * 4 + 2 * 8 * 128 * 4
    vmem_limit = int(min(usable,
                         max(16 << 20,
                             x_bytes + const_bytes + scr_bytes + io_bytes + (8 << 20))))

    outs = pl.pallas_call(
        kernel,
        out_shape=out_shape,
        grid_spec=pltpu.PrefetchScalarGridSpec(
            num_scalar_prefetch=0,
            grid=(nb, C, nhw),                       # reduction axes (c, j) last
            in_specs=in_specs,
            out_specs=out_specs,
            scratch_shapes=scratch),
        compiler_params=pltpu.CompilerParams(
            dimension_semantics=("parallel", "arbitrary", "arbitrary"),
            vmem_limit_bytes=vmem_limit),
    )(*args)

    if compute_loss:
        preds_p, loss_part = outs
        loss = jnp.sum(loss_part[:, 0, 0]) * (1.0 / float(B * K))
        return preds_p[:B, :K], loss
    return outs[:B, :K], None


def img_embeddings(patterns):
    """Pooled image embeddings (GAP features); interface glue, not the hot path."""
    B, C, H, W = patterns.shape
    return jnp.mean(patterns.reshape(B, C, H * W), axis=-1)


if __name__ == "__main__":
    # Small shapes consistent with an NCHW image model.
    B, C, H, W = 2, 4, 16, 16
    K = 8  # predictions per image

    key = jax.random.PRNGKey(0)
    k_x, k_w, k_b, k_t = jax.random.split(key, 4)

    patterns = jax.random.normal(k_x, (B, C, H, W), dtype=jnp.float32)
    targets = jax.random.normal(k_t, (B, K), dtype=jnp.float32)
    w = jax.random.normal(k_w, (C, K), dtype=jnp.float32) * 0.1
    b = jax.random.normal(k_b, (1, K), dtype=jnp.float32) * 0.01

    # f32 path (VALU GAP) with loss.
    preds, loss = iod_forward(patterns, w, b, targets=targets)
    jax.block_until_ready((preds, loss))

    # Reference in plain JAX.
    feats_ref = jnp.mean(patterns.reshape(B, C, H * W), axis=-1)
    preds_ref = feats_ref @ w + b
    loss_ref = jnp.mean((preds_ref - targets) ** 2)
    assert preds.shape == (B, K)
    assert jnp.allclose(preds, preds_ref, atol=1e-3, rtol=1e-3), "prediction mismatch"
    assert jnp.allclose(loss, loss_ref, atol=1e-3, rtol=1e-3), "loss mismatch"

    # targets=None path: no loss computed, losses must be None.
    preds_only, losses_none = iod_forward(patterns, w, b, targets=None)
    jax.block_until_ready(preds_only)
    assert losses_none is None
    assert jnp.allclose(preds_only, preds_ref, atol=1e-3, rtol=1e-3), \
        "prediction mismatch (no targets)"

    # bf16 path (MXU ones-dot GAP with f32 accumulation).
    patterns_bf = patterns.astype(jnp.bfloat16)
    preds_bf, _ = iod_forward(patterns_bf, w, b, targets=None)
    jax.block_until_ready(preds_bf)
    feats_bf_ref = jnp.mean(patterns_bf.astype(jnp.float32).reshape(B, C, H * W), axis=-1)
    preds_bf_ref = feats_bf_ref @ w + b
    assert jnp.allclose(preds_bf, preds_bf_ref, atol=5e-3, rtol=5e-3), \
        "bf16 prediction mismatch"

    print("KERNEL_OK")
</pallas_src>

<mosaic_0001>
module attributes {stable_mosaic.version = 11 : i64} {
  func.func @kernel(%arg0: i32, %arg1: i32, %arg2: i32, %arg3: memref<2x256xf32, #tpu.memory_space<vmem>>, %arg4: memref<1x1x128xf32, #tpu.memory_space<vmem>>, %arg5: memref<1x128xf32, #tpu.memory_space<vmem>>, %arg6: memref<2x128xf32, #tpu.memory_space<vmem>>, %arg7: memref<2x128xf32, #tpu.memory_space<vmem>>, %arg8: memref<1x8x128xf32, #tpu.memory_space<vmem>>, %arg9: memref<2x128xf32, #tpu.memory_space<vmem>>, %arg10: memref<2x128xf32, #tpu.memory_space<vmem>>) attributes {dimension_semantics = [#tpu.dimension_semantics<parallel>, #tpu.dimension_semantics<arbitrary>, #tpu.dimension_semantics<arbitrary>], iteration_bounds = array<i64: 1, 4, 1>, scalar_prefetch = 0 : i64, scratch_operands = 2 : i64, tpu.core_type = #tpu.core_type<tc>, window_params = [{transform_indices = @transform_0, window_bounds = array<i64: 2, 256>}, {transform_indices = @transform_1, window_bounds = array<i64: 1, 1, 128>}, {pipeline_mode = #tpu.pipeline_mode<synchronous>, transform_indices = @transform_2, window_bounds = array<i64: 1, 128>}, {transform_indices = @transform_3, window_bounds = array<i64: 2, 128>}, {transform_indices = @transform_4, window_bounds = array<i64: 2, 128>}, {transform_indices = @transform_5, window_bounds = array<i64: 1, 8, 128>}]} {
    %c0_i32 = arith.constant 0 : i32
    %0 = arith.cmpi eq, %arg2, %c0_i32 : i32
    %1 = arith.extui %0 : i1 to i32
    %c0_i32_0 = arith.constant 0 : i32
    %2 = arith.cmpi ne, %1, %c0_i32_0 : i32
    scf.if %2 {
      %cst = arith.constant 0.000000e+00 : f32
      %23 = vector.broadcast %cst : f32 to vector<2x128xf32>
      %c0_13 = arith.constant 0 : index
      %c0_14 = arith.constant 0 : index
      %24 = vector.load %arg9[%c0_13, %c0_14] : memref<2x128xf32, #tpu.memory_space<vmem>>, vector<2x128xf32>
      tpu.vector_store %arg9[%c0_13, %c0_14], %23 {strides = array<i32>} : memref<2x128xf32, #tpu.memory_space<vmem>>, vector<2x128xf32>,
    } else {
    }
    %c0_i32_1 = arith.constant 0 : i32
    %3 = arith.cmpi eq, %arg1, %c0_i32_1 : i32
    %c0_i32_2 = arith.constant 0 : i32
    %4 = arith.cmpi eq, %arg2, %c0_i32_2 : i32
    %5 = arith.andi %3, %4 : i1
    %6 = arith.extui %5 : i1 to i32
    %c0_i32_3 = arith.constant 0 : i32
    %7 = arith.cmpi ne, %6, %c0_i32_3 : i32
    scf.if %7 {
      %cst = arith.constant 0.000000e+00 : f32
      %23 = vector.broadcast %cst : f32 to vector<2x128xf32>
      %c0_13 = arith.constant 0 : index
      %c0_14 = arith.constant 0 : index
      %24 = vector.load %arg10[%c0_13, %c0_14] : memref<2x128xf32, #tpu.memory_space<vmem>>, vector<2x128xf32>
      tpu.vector_store %arg10[%c0_13, %c0_14], %23 {strides = array<i32>} : memref<2x128xf32, #tpu.memory_space<vmem>>, vector<2x128xf32>,
    } else {
    }
    %c0 = arith.constant 0 : index
    %c0_4 = arith.constant 0 : index
    %8 = vector.load %arg3[%c0, %c0_4] : memref<2x256xf32, #tpu.memory_space<vmem>>, vector<2x256xf32>
    %9 = vector.extract_strided_slice %8 {offsets = [0, 0], sizes = [2, 128], strides = [1, 1]} : vector<2x256xf32> to vector<2x128xf32>
    %10 = vector.extract_strided_slice %8 {offsets = [0, 128], sizes = [2, 128], strides = [1, 1]} : vector<2x256xf32> to vector<2x128xf32>
    %11 = arith.addf %9, %10 : vector<2x128xf32>
    %c0_5 = arith.constant 0 : index
    %c0_6 = arith.constant 0 : index
    %12 = vector.load %arg9[%c0_5, %c0_6] : memref<2x128xf32, #tpu.memory_space<vmem>>, vector<2x128xf32>
    %13 = arith.addf %12, %11 : vector<2x128xf32>
    %c0_7 = arith.constant 0 : index
    %c0_8 = arith.constant 0 : index
    %14 = vector.load %arg9[%c0_7, %c0_8] : memref<2x128xf32, #tpu.memory_space<vmem>>, vector<2x128xf32>
    tpu.vector_store %arg9[%c0_7, %c0_8], %13 {strides = array<i32>} : memref<2x128xf32, #tpu.memory_space<vmem>>, vector<2x128xf32>,
    %c0_i32_9 = arith.constant 0 : i32
    %15 = arith.cmpi eq, %arg2, %c0_i32_9 : i32
    %16 = arith.extui %15 : i1 to i32
    %c0_i32_10 = arith.constant 0 : i32
    %17 = arith.cmpi ne, %16, %c0_i32_10 : i32
    scf.if %17 {
      %c0_13 = arith.constant 0 : index
      %c0_14 = arith.constant 0 : index
      %23 = vector.load %arg9[%c0_13, %c0_14] : memref<2x128xf32, #tpu.memory_space<vmem>>, vector<2x128xf32>
      %cst = arith.constant dense<0.000000e+00> : vector<2xf32>
      %24 = vector.multi_reduction <add>, %23, %cst [1] : vector<2x128xf32> to vector<2xf32>
      %25 = vector.shape_cast %24 : vector<2xf32> to vector<2x1xf32>
      %c0_15 = arith.constant 0 : index
      %c0_16 = arith.constant 0 : index
      %26 = vector.load %arg10[%c0_15, %c0_16] : memref<2x128xf32, #tpu.memory_space<vmem>>, vector<2x128xf32>
      %c0_17 = arith.constant 0 : index
      %c0_18 = arith.constant 0 : index
      %c0_19 = arith.constant 0 : index
      %27 = vector.load %arg4[%c0_17, %c0_18, %c0_19] : memref<1x1x128xf32, #tpu.memory_space<vmem>>, vector<1x1x128xf32>
      %28 = vector.shape_cast %27 : vector<1x1x128xf32> to vector<1x128xf32>
      %29 = vector.broadcast %25 : vector<2x1xf32> to vector<2x128xf32>
      %30 = vector.broadcast %28 : vector<1x128xf32> to vector<2x128xf32>
      %31 = arith.mulf %29, %30 : vector<2x128xf32>
      %32 = arith.addf %26, %31 : vector<2x128xf32>
      %c0_20 = arith.constant 0 : index
      %c0_21 = arith.constant 0 : index
      %33 = vector.load %arg10[%c0_20, %c0_21] : memref<2x128xf32, #tpu.memory_space<vmem>>, vector<2x128xf32>
      tpu.vector_store %arg10[%c0_20, %c0_21], %32 {strides = array<i32>} : memref<2x128xf32, #tpu.memory_space<vmem>>, vector<2x128xf32>,
    } else {
    }
    %c0_i32_11 = arith.constant 0 : i32
    %18 = arith.cmpi eq, %arg2, %c0_i32_11 : i32
    %c3_i32 = arith.constant 3 : i32
    %19 = arith.cmpi eq, %arg1, %c3_i32 : i32
    %20 = arith.andi %18, %19 : i1
    %21 = arith.extui %20 : i1 to i32
    %c0_i32_12 = arith.constant 0 : i32
    %22 = arith.cmpi ne, %21, %c0_i32_12 : i32
    scf.if %22 {
      %c0_13 = arith.constant 0 : index
      %c0_14 = arith.constant 0 : index
      %23 = vector.load %arg10[%c0_13, %c0_14] : memref<2x128xf32, #tpu.memory_space<vmem>>, vector<2x128xf32>
      %c0_15 = arith.constant 0 : index
      %c0_16 = arith.constant 0 : index
      %24 = vector.load %arg5[%c0_15, %c0_16] : memref<1x128xf32, #tpu.memory_space<vmem>>, vector<1x128xf32>
      %25 = vector.broadcast %24 : vector<1x128xf32> to vector<2x128xf32>
      %26 = arith.addf %23, %25 : vector<2x128xf32>
      %c0_17 = arith.constant 0 : index
      %c0_18 = arith.constant 0 : index
      %27 = vector.load %arg7[%c0_17, %c0_18] : memref<2x128xf32, #tpu.memory_space<vmem>>, vector<2x128xf32>
      tpu.vector_store %arg7[%c0_17, %c0_18], %26 {strides = array<i32>} : memref<2x128xf32, #tpu.memory_space<vmem>>, vector<2x128xf32>,
      %c0_19 = arith.constant 0 : index
      %c0_20 = arith.constant 0 : index
      %28 = vector.load %arg6[%c0_19, %c0_20] : memref<2x128xf32, #tpu.memory_space<vmem>>, vector<2x128xf32>
      %29 = arith.subf %26, %28 : vector<2x128xf32>
      %30 = tpu.iota {dimensions = array<i32: 0>} : vector<2x128xi32>
      %c2_i32 = arith.constant 2 : i32
      %31 = arith.muli %arg0, %c2_i32 : i32
      %32 = vector.broadcast %31 : i32 to vector<2x128xi32>
      %33 = arith.addi %30, %32 : vector<2x128xi32>
      %34 = tpu.iota {dimensions = array<i32: 1>} : vector<2x128xi32>
      %c2_i32_21 = arith.constant 2 : i32
      %35 = vector.broadcast %c2_i32_21 : i32 to vector<2x128xi32>
      %36 = arith.cmpi slt, %33, %35 : vector<2x128xi32>
      %c8_i32 = arith.constant 8 : i32
      %37 = vector.broadcast %c8_i32 : i32 to vector<2x128xi32>
      %38 = arith.cmpi slt, %34, %37 : vector<2x128xi32>
      %39 = arith.andi %36, %38 : vector<2x128xi1>
      %40 = arith.mulf %29, %29 : vector<2x128xf32>
      %cst = arith.constant 0.000000e+00 : f32
      %41 = vector.broadcast %cst : f32 to vector<2x128xf32>
      %42 = arith.select %39, %40, %41 : vector<2x128xi1>, vector<2x128xf32>
      %cst_22 = arith.constant 0.000000e+00 : f32
      %43 = vector.broadcast %cst_22 : f32 to vector<1x8x128xf32>
      %44 = vector.shape_cast %42 : vector<2x128xf32> to vector<1x2x128xf32>
      %cst_23 = arith.constant dense<0.000000e+00> : vector<1xf32>
      %45 = vector.multi_reduction <add>, %44, %cst_23 [1, 2] : vector<1x2x128xf32> to vector<1xf32>
      %46 = vector.shape_cast %45 : vector<1xf32> to vector<1x1x1xf32>
      %47 = vector.extract %46[0, 0, 0] : f32 from vector<1x1x1xf32>
      %48 = vector.broadcast %47 : f32 to vector<1x8x128xf32>
      %49 = arith.addf %43, %48 : vector<1x8x128xf32>
      %c0_24 = arith.constant 0 : index
      %c0_25 = arith.constant 0 : index
      %c0_26 = arith.constant 0 : index
      %50 = vector.load %arg8[%c0_24, %c0_25, %c0_26] : memref<1x8x128xf32, #tpu.memory_space<vmem>>, vector<1x8x128xf32>
      tpu.vector_store %arg8[%c0_24, %c0_25, %c0_26], %49 {strides = array<i32>} : memref<1x8x128xf32, #tpu.memory_space<vmem>>, vector<1x8x128xf32>,
    } else {
    }
    return
  }
  func.func @transform_0(%arg0: i32, %arg1: i32, %arg2: i32) -> (i32, i32) {
    %c1_i32 = arith.constant 1 : i32
    %0 = arith.muli %arg1, %c1_i32 : i32
    %1 = arith.addi %0, %arg2 : i32
    %c0_i32 = arith.constant 0 : i32
    return %arg0, %1 : i32, i32
  }
  func.func @transform_1(%arg0: i32, %arg1: i32, %arg2: i32) -> (i32, i32, i32) {
    %c0_i32 = arith.constant 0 : i32
    %c0_i32_0 = arith.constant 0 : i32
    %c0_i32_1 = arith.constant 0 : i32
    return %arg1, %c0_i32, %c0_i32_0 : i32, i32, i32
  }
  func.func @transform_2(%arg0: i32, %arg1: i32, %arg2: i32) -> (i32, i32) {
    %c0_i32 = arith.constant 0 : i32
    %c0_i32_0 = arith.constant 0 : i32
    %c0_i32_1 = arith.constant 0 : i32
    return %c0_i32, %c0_i32_0 : i32, i32
  }
  func.func @transform_3(%arg0: i32, %arg1: i32, %arg2: i32) -> (i32, i32) {
    %c0_i32 = arith.constant 0 : i32
    %c0_i32_0 = arith.constant 0 : i32
    return %arg0, %c0_i32 : i32, i32
  }
  func.func @transform_4(%arg0: i32, %arg1: i32, %arg2: i32) -> (i32, i32) {
    %c0_i32 = arith.constant 0 : i32
    %c0_i32_0 = arith.constant 0 : i32
    return %arg0, %c0_i32 : i32, i32
  }
  func.func @transform_5(%arg0: i32, %arg1: i32, %arg2: i32) -> (i32, i32, i32) {
    %c0_i32 = arith.constant 0 : i32
    %c0_i32_0 = arith.constant 0 : i32
    %c0_i32_1 = arith.constant 0 : i32
    return %arg0, %c0_i32, %c0_i32_0 : i32, i32, i32
  }
}

</mosaic_0001>

<llo_original>
// kernel: tpu_custom_call.1
$region0: #{tpu_custom_call.1}
  #allocation0 [shape = 'u32[]', space=smem, size = 0x4, offset = 0x4, fixed_abs, tag = 'smem constant byte address 0x4 - core index']
  #allocation1 [shape = 'u32[144,128]{1,0:T(1,128)}', space=vmem, size = 0x12000, scoped, tag = 'internal scratch']
  #allocation2 [shape = 'f32[2,128]{1,0:T(2,128)}', space=vmem, size = 0x400, scoped, tag = 'scratch operand']
  #allocation3 [shape = 'f32[2,128]{1,0:T(2,128)}', space=vmem, size = 0x400, scoped, tag = 'scratch operand']
  %s0 = inlined_call_operand.hbm [shape: f32[2,1024], index: 0, kind: input, shape index: {}]
  %s1 = inlined_call_operand.hbm [shape: f32[4,1,128], index: 1, kind: input, shape index: {}]
  %s2 = inlined_call_operand.vmem [shape: f32[1,128], index: 2, kind: input, shape index: {}]
  %s3 = inlined_call_operand.vmem [shape: f32[2,128], index: 3, kind: input, shape index: {}]
  %s4 = inlined_call_operand.hbm [shape: f32[2,128], index: 4, kind: output, shape index: {0}]
  %s5 = inlined_call_operand.hbm [shape: f32[1,8,128], index: 5, kind: output, shape index: {1}]
  %6 = xla_tuple %s4, %s5
  %s7 = sld [smem:[#allocation0]]
  $region81: #{tpu_custom_call.1} parent=0
    _
  %s9 = ssub.s32 1, %s7
  %s10 = scalar_select 0, %s9, %s7
  $region1: #{tpu_custom_call.1} parent=0
    #allocation4 [shape = 'u8[4096]{0}', space=vmem, size = 0x1000, scoped, tag = 'input window, operand 0']
    #allocation5 [shape = 's32[2]{0}', space=sflag, size = 0x8, scoped, tag = 'scoped memory for tpu_custom_call.1']
    #allocation6 [shape = 's32[2]{0}', space=sflag, size = 0x8, scoped, tag = 'scoped memory for tpu_custom_call.1']
    #allocation7 [shape = 'u8[1024]{0}', space=vmem, size = 0x400, scoped, tag = 'input window, operand 1']
    #allocation8 [shape = 's32[2]{0}', space=sflag, size = 0x8, scoped, tag = 'scoped memory for tpu_custom_call.1']
    #allocation9 [shape = 'u8[1024]{0}', space=vmem, size = 0x400, scoped, tag = 'output window, operand 0, single buffered']
    #allocation10 [shape = 'u8[4096]{0}', space=vmem, size = 0x1000, scoped, tag = 'output window, operand 1, single buffered']
    #allocation11 [shape = 's32[1]{0}', space=sflag, size = 0x4, scoped, tag = 'scoped memory for tpu_custom_call.1']
    %11 = vsyncpa [#allocation5], 0
    %s12 = scalar_lea.sflag [#allocation5], 1
    %13 = vsyncpa %s12, 0
    %14 = vsyncpa [#allocation8], 0
    %s15 = scalar_lea.sflag [#allocation8], 1
    %16 = vsyncpa %s15, 0
    %17 = vsyncpa [#allocation6], 0
    %18 = vsyncpa [#allocation11], 0
    loop: start=0, step=1, limit=6
    $region2: #{tpu_custom_call.1} parent=1 // loop_pre_header
      _
    $region3: #{tpu_custom_call.1} parent=1 // loop_header
      %s20 = sphi 0, %s24
      %p21 = scmp.ge.s32.totalorder %s20, 6
      %s27 = sphi 0, %s46
      %s28 = sphi 0, %s42
      %s29 = sphi 0, %s38
      %s30 = sphi 0, %s27
      %s31 = sphi 0, %s28
      %s32 = sphi 0, %s29
      %s33 = sphi 0, %s30
      %s34 = sphi 0, %s31
      %s35 = sphi 0, %s32
      %s53 = sphi 0, %s55
      %s56 = sphi 0, %s53
      %s57 = sphi 0, %s56
      %s73 = sphi 0, %s57
      %s79 = sphi 0, %s81
      %s82 = sphi 0, %s79
      %s83 = sphi 0, %s82
      %s99 = sphi 0, %s83
      %s103 = sphi 0, %s103
      %s105 = sphi 0, %s103
      %s106 = sphi 0, %s105
      %s120 = sphi 0, %s106
      %s126 = sphi 0, %s128
      %s129 = sphi 0, %s126
      %s130 = sphi 0, %s129
      %s146 = sphi 0, %s130
      %s152 = sphi 0, %s154
      %s155 = sphi 0, %s152
      %s156 = sphi 0, %s155
      %s172 = sphi 0, %s156
      %s178 = sphi 0, %s180
      %s181 = sphi 0, %s178
      %s182 = sphi 0, %s181
      %s198 = sphi 0, %s182
    $region4: #{tpu_custom_call.1} parent=1 // loop_header_branch
      %23 = sbr.rel (%p21) target = $region8
    $region5: #{tpu_custom_call.1} parent=1 // loop_body
      %s25 = ssub.s32 %s20, 1
      %s26 = ssub.s32 %s20, 2
      %s36 = sadd.s32 1, %s29
      %p37 = scmp.ge.s32.totalorder %s36, 1
      %s38 = scalar_select %p37, 0, %s36
      %s39 = sadd.s32 1, %s28
      %s40 = scalar_select %p37, %s39, %s28
      %p41 = scmp.ge.s32.totalorder %s40, 4
      %s42 = scalar_select %p41, 0, %s40
      %s43 = sadd.s32 1, %s27
      %s44 = scalar_select %p41, %s43, %s27
      %p45 = scmp.ge.s32.totalorder %s44, 1
      %s46 = scalar_select %p45, 0, %s44
      %s47 = sadd.s32 %s28, %s29
      %s48 = sadd.s32 %s42, %s38
      %s49 = ssub.s32 %s27, %s46
      %s50 = ssub.s32 %s47, %s48
      %s51 = sor.u32 %s49, %s50
      %p52 = scmp.eq.s32.totalorder %s51, 0
      %s54 = sadd.s32 %s53, 1
      %s55 = scalar_select %p52, %s53, %s54
      %p58 = pneg %p52
      %p59 = scmp.eq.s32.totalorder %s20, 3
      %p60 = por %p58, %p59
      %p61 = scmp.ne.s32.totalorder %s53, %s56
      %p62 = scmp.eq.s32.totalorder %s20, 0
      %p63 = por %p61, %p62
      %p64 = scmp.ne.s32.totalorder %s53, %s56
      %p65 = scmp.eq.s32.totalorder %s25, 3
      %p66 = por %p64, %p65
      %p67 = scmp.ne.s32.totalorder %s56, %s57
      %p68 = scmp.eq.s32.totalorder %s25, 0
      %p69 = por %p67, %p68
      %p70 = scmp.ne.s32.totalorder %s56, %s57
      %p71 = scmp.eq.s32.totalorder %s26, 3
      %p72 = por %p70, %p71
      %p74 = scmp.ne.s32.totalorder %s57, %s73
      %p75 = scmp.eq.s32.totalorder %s26, 0
      %p76 = por %p74, %p75
      %s77 = ssub.s32 %s28, %s42
      %p78 = scmp.eq.s32.totalorder %s77, 0
      %s80 = sadd.s32 %s79, 1
      %s81 = scalar_select %p78, %s79, %s80
      %p84 = pneg %p78
      %p85 = scmp.eq.s32.totalorder %s20, 3
      %p86 = por %p84, %p85
      %p87 = scmp.ne.s32.totalorder %s79, %s82
      %p88 = scmp.eq.s32.totalorder %s20, 0
      %p89 = por %p87, %p88
      %p90 = scmp.ne.s32.totalorder %s79, %s82
      %p91 = scmp.eq.s32.totalorder %s25, 3
      %p92 = por %p90, %p91
      %p93 = scmp.ne.s32.totalorder %s82, %s83
      %p94 = scmp.eq.s32.totalorder %s25, 0
      %p95 = por %p93, %p94
      %p96 = scmp.ne.s32.totalorder %s82, %s83
      %p97 = scmp.eq.s32.totalorder %s26, 3
      %p98 = por %p96, %p97
      %p100 = scmp.ne.s32.totalorder %s83, %s99
      %p101 = scmp.eq.s32.totalorder %s26, 0
      %p102 = por %p100, %p101
      %s104 = sadd.s32 %s103, 1
      %p107 = scmp.eq.s32.totalorder %s20, 3
      %p108 = scmp.ne.s32.totalorder %s103, %s105
      %p109 = scmp.eq.s32.totalorder %s20, 0
      %p110 = por %p108, %p109
      %p111 = scmp.ne.s32.totalorder %s103, %s105
      %p112 = scmp.eq.s32.totalorder %s25, 3
      %p113 = por %p111, %p112
      %p114 = scmp.ne.s32.totalorder %s105, %s106
      %p115 = scmp.eq.s32.totalorder %s25, 0
      %p116 = por %p114, %p115
      %p117 = scmp.ne.s32.totalorder %s105, %s106
      %p118 = scmp.eq.s32.totalorder %s26, 3
      %p119 = por %p117, %p118
      %p121 = scmp.ne.s32.totalorder %s106, %s120
      %p122 = scmp.eq.s32.totalorder %s26, 0
      %p123 = por %p121, %p122
      %s124 = ssub.s32 %s27, %s46
      %p125 = scmp.eq.s32.totalorder %s124, 0
      %s127 = sadd.s32 %s126, 1
      %s128 = scalar_select %p125, %s126, %s127
      %p131 = pneg %p125
      %p132 = scmp.eq.s32.totalorder %s20, 3
      %p133 = por %p131, %p132
      %p134 = scmp.ne.s32.totalorder %s126, %s129
      %p135 = scmp.eq.s32.totalorder %s20, 0
      %p136 = por %p134, %p135
      %p137 = scmp.ne.s32.totalorder %s126, %s129
      %p138 = scmp.eq.s32.totalorder %s25, 3
      %p139 = por %p137, %p138
      %p140 = scmp.ne.s32.totalorder %s129, %s130
      %p141 = scmp.eq.s32.totalorder %s25, 0
      %p142 = por %p140, %p141
      %p143 = scmp.ne.s32.totalorder %s129, %s130
      %p144 = scmp.eq.s32.totalorder %s26, 3
      %p145 = por %p143, %p144
      %p147 = scmp.ne.s32.totalorder %s130, %s146
      %p148 = scmp.eq.s32.totalorder %s26, 0
      %p149 = por %p147, %p148
      %s150 = ssub.s32 %s27, %s46
      %p151 = scmp.eq.s32.totalorder %s150, 0
      %s153 = sadd.s32 %s152, 1
      %s154 = scalar_select %p151, %s152, %s153
      %p157 = pneg %p151
      %p158 = scmp.eq.s32.totalorder %s20, 3
      %p159 = por %p157, %p158
      %p160 = scmp.ne.s32.totalorder %s152, %s155
      %p161 = scmp.eq.s32.totalorder %s20, 0
      %p162 = por %p160, %p161
      %p163 = scmp.ne.s32.totalorder %s152, %s155
      %p164 = scmp.eq.s32.totalorder %s25, 3
      %p165 = por %p163, %p164
      %p166 = scmp.ne.s32.totalorder %s155, %s156
      %p167 = scmp.eq.s32.totalorder %s25, 0
      %p168 = por %p166, %p167
      %p169 = scmp.ne.s32.totalorder %s155, %s156
      %p170 = scmp.eq.s32.totalorder %s26, 3
      %p171 = por %p169, %p170
      %p173 = scmp.ne.s32.totalorder %s156, %s172
      %p174 = scmp.eq.s32.totalorder %s26, 0
      %p175 = por %p173, %p174
      %s176 = ssub.s32 %s27, %s46
      %p177 = scmp.eq.s32.totalorder %s176, 0
      %s179 = sadd.s32 %s178, 1
      %s180 = scalar_select %p177, %s178, %s179
      %p183 = pneg %p177
      %p184 = scmp.eq.s32.totalorder %s20, 3
      %p185 = por %p183, %p184
      %p186 = scmp.ne.s32.totalorder %s178, %s181
      %p187 = scmp.eq.s32.totalorder %s20, 0
      %p188 = por %p186, %p187
      %p189 = scmp.ne.s32.totalorder %s178, %s181
      %p190 = scmp.eq.s32.totalorder %s25, 3
      %p191 = por %p189, %p190
      %p192 = scmp.ne.s32.totalorder %s181, %s182
      %p193 = scmp.eq.s32.totalorder %s25, 0
      %p194 = por %p192, %p193
      %p195 = scmp.ne.s32.totalorder %s181, %s182
      %p196 = scmp.eq.s32.totalorder %s26, 3
      %p197 = por %p195, %p196
      %p199 = scmp.ne.s32.totalorder %s182, %s198
      %p200 = scmp.eq.s32.totalorder %s26, 0
      %p201 = por %p199, %p200
      %p202 = scmp.le.s32.totalorder 1, %s20
      %p203 = scmp.lt.s32.totalorder %s20, 5
      %p204 = pnand %p202, %p203
      %p205 = pneg %p204
      // Predicated region
      $region9: #{tpu_custom_call.1} parent=5 // pred_check
        _
      $region10: #{tpu_custom_call.1} parent=5 // pred_check_branch
        %207 = sbr.rel (%p204) target = $region12
      $region11: #{tpu_custom_call.1} parent=5 // pred_region
        %s208 = ssub.s32 %s20, 1
        // Predicated region
        $region13: #{tpu_custom_call.1} parent=11 // pred_check
          %p209 = pneg %p116
        $region14: #{tpu_custom_call.1} parent=11 // pred_check_branch
          %211 = sbr.rel (%p209) target = $region16
        $region15: #{tpu_custom_call.1} parent=11 // pred_region
          _
        $region16: #{tpu_custom_call.1} parent=11 // pred_fallthru
          _
        // Predicated region
        $region17: #{tpu_custom_call.1} parent=11 // pred_check
          %p212 = pneg %p142
        $region18: #{tpu_custom_call.1} parent=11 // pred_check_branch
          %214 = sbr.rel (%p212) target = $region20
        $region19: #{tpu_custom_call.1} parent=11 // pred_region
          %p215 = scmp.lt.s32.totalorder %s30, 0
          %s216 = scalar_select %p215, %s30, 0
          %s217 = smul.addr %s216, 2
          %s218 = scalar_lea.vmem %s3, %s217
        $region20: #{tpu_custom_call.1} parent=11 // pred_fallthru
          _
      $region12: #{tpu_custom_call.1} parent=5 // pred_fallthru
        _
      %p219 = scmp.lt.s32.totalorder %s20, 4
      // Predicated region
      $region21: #{tpu_custom_call.1} parent=5 // pred_check
        %p220 = pneg %p219
      $region22: #{tpu_custom_call.1} parent=5 // pred_check_branch
        %222 = sbr.rel (%p220) target = $region24
      $region23: #{tpu_custom_call.1} parent=5 // pred_region
        // Predicated region
        $region25: #{tpu_custom_call.1} parent=23 // pred_check
          %p223 = pneg %p63
        $region26: #{tpu_custom_call.1} parent=23 // pred_check_branch
          %225 = sbr.rel (%p223) target = $region28
        $region27: #{tpu_custom_call.1} parent=23 // pred_region
          %s226 = sand.u32 %s53, 1
          %s227 = scalar_lea.sflag [#allocation5], %s226
          %s228 = sand.u32 %s53, 1
          %s229 = smul.addr %s228, 4
          %s230 = scalar_lea.vmem [#allocation4], %s229
          %s231 = sadd.s32 %s28, %s29
          %s232 = smul.u32 2, %s231
          %s234 = ssub.s32 64, 64
          %235 = vsyncadd %s227, %s234
          %s236 = smul.addr %s27, 8
          %s237 = sadd.s32 %s232, %s236
          %s238 = smul.addr %s237, 32
          %s239 = scalar_lea.hbm %s0, %s238
          %s241 = sshll.u32 %s230, 4
          %s242 = int_to_ptr.vmem [resolvable:$true] %s241
          %244 = dma.hbm_to_vmem [thread:$0]  %s239, 64, %s242, %s227
        $region28: #{tpu_custom_call.1} parent=23 // pred_fallthru
          _
        // Predicated region
        $region29: #{tpu_custom_call.1} parent=23 // pred_check
          %p245 = pneg %p89
        $region30: #{tpu_custom_call.1} parent=23 // pred_check_branch
          %247 = sbr.rel (%p245) target = $region32
        $region31: #{tpu_custom_call.1} parent=23 // pred_region
          %s248 = sand.u32 %s79, 1
          %s249 = scalar_lea.sflag [#allocation8], %s248
          %s250 = sand.u32 %s79, 1
          %s251 = scalar_lea.vmem [#allocation7], %s250
          %s253 = ssub.s32 16, 16
          %254 = vsyncadd %s249, %s253
          %s255 = smul.addr %s28, 16
          %s256 = scalar_lea.hbm %s1, %s255
          %s258 = sshll.u32 %s251, 4
          %s259 = int_to_ptr.vmem [resolvable:$true] %s258
          %261 = dma.hbm_to_vmem [thread:$0]  %s256, 16, %s259, %s249
        $region32: #{tpu_custom_call.1} parent=23 // pred_fallthru
          _
      $region24: #{tpu_custom_call.1} parent=5 // pred_fallthru
        _
      %p262 = scmp.le.s32.totalorder 1, %s20
      %p263 = scmp.lt.s32.totalorder %s20, 5
      %p264 = pnand %p262, %p263
      %p265 = pneg %p264
      // Predicated region
      $region33: #{tpu_custom_call.1} parent=5 // pred_check
        _
      $region34: #{tpu_custom_call.1} parent=5 // pred_check_branch
        %267 = sbr.rel (%p264) target = $region36
      $region35: #{tpu_custom_call.1} parent=5 // pred_region
        %s268 = ssub.s32 %s20, 1
        %s269 = sand.u32 %s56, 1
        %s270 = scalar_lea.sflag [#allocation5], %s269
        %s271 = sand.u32 %s56, 1
        %s272 = smul.addr %s271, 4
        %s273 = scalar_lea.vmem [#allocation4], %s272
        // Predicated region
        $region37: #{tpu_custom_call.1} parent=35 // pred_check
          %p274 = pneg %p69
        $region38: #{tpu_custom_call.1} parent=35 // pred_check_branch
          %276 = sbr.rel (%p274) target = $region40
        $region39: #{tpu_custom_call.1} parent=35 // pred_region
          %277 = dma.done %s270, 64
        $region40: #{tpu_custom_call.1} parent=35 // pred_fallthru
          _
        %s278 = sand.u32 %s82, 1
        %s279 = scalar_lea.sflag [#allocation8], %s278
        %s280 = sand.u32 %s82, 1
        %s281 = scalar_lea.vmem [#allocation7], %s280
        // Predicated region
        $region41: #{tpu_custom_call.1} parent=35 // pred_check
          %p282 = pneg %p95
        $region42: #{tpu_custom_call.1} parent=35 // pred_check_branch
          %284 = sbr.rel (%p282) target = $region44
        $region43: #{tpu_custom_call.1} parent=35 // pred_region
          %285 = dma.done %s279, 16
        $region44: #{tpu_custom_call.1} parent=35 // pred_fallthru
          _
        %s286 = sand.u32 %s56, 1
        %s287 = scalar_lea.sflag [#allocation5], %s286
        %s288 = sand.u32 %s56, 1
        %s289 = smul.addr %s288, 4
        %s290 = scalar_lea.vmem [#allocation4], %s289
        %p291 = pneg %p69
        %p292 = pneg %p66
        %s293 = sand.u32 %s82, 1
        %s294 = scalar_lea.sflag [#allocation8], %s293
        %s295 = sand.u32 %s82, 1
        %s296 = scalar_lea.vmem [#allocation7], %s295
        %p297 = pneg %p95
        %p298 = pneg %p92
        %p299 = pneg %p116
        %p300 = pneg %p113
        %p301 = scmp.lt.s32.totalorder %s30, 0
        %s302 = scalar_select %p301, %s30, 0
        %s303 = smul.addr %s302, 2
        %s304 = scalar_lea.vmem %s3, %s303
        %p305 = pneg %p142
        %p306 = pneg %p139
        %p307 = pneg %p168
        %p308 = pneg %p165
        %p309 = pneg %p194
        %p310 = pneg %p191
        %s311 = sadd.s32 %s31, %s32
        %s312 = smul.u32 2, %s311
        %p313 = scmp.lt.s32.totalorder %s30, 0
        %s314 = scalar_select %p313, %s30, 0
        %s315 = smul.addr %s314, 2
        %s316 = scalar_lea.vmem %s3, %s315
        %p317 = scmp.eq.s32.totalorder %s32, 0
        // Predicated region
        $region45: #{tpu_custom_call.1} parent=35 // pred_check
          %p318 = pneg %p317
        $region46: #{tpu_custom_call.1} parent=35 // pred_check_branch
          %320 = sbr.rel (%p318) target = $region48
        $region47: #{tpu_custom_call.1} parent=35 // pred_region
          %321 = vst [vmem:[#allocation2] sm:$0x3] 0.0
        $region48: #{tpu_custom_call.1} parent=35 // pred_fallthru
          _
        %p322 = scmp.eq.s32.totalorder %s31, 0
        %p323 = pnand %p322, %p317
        %p324 = pneg %p323
        // Predicated region
        $region49: #{tpu_custom_call.1} parent=35 // pred_check
          _
        $region50: #{tpu_custom_call.1} parent=35 // pred_check_branch
          %326 = sbr.rel (%p323) target = $region52
        $region51: #{tpu_custom_call.1} parent=35 // pred_region
          %327 = vst [vmem:[#allocation3] sm:$0x3] 0.0
        $region52: #{tpu_custom_call.1} parent=35 // pred_fallthru
          _
        %v328 = vld [vmem:[%s273] sm:$0xf]
        %v330 = vrot.slane %v328, 2
        %v332 = vadd.f32 %v328, %v330
        %v333 = vld [vmem:[#allocation2] sm:$0x3]
        %v334 = vadd.f32 %v333, %v332
        %335 = vst [vmem:[#allocation2] sm:$0x3] %v334
        // Predicated region
        $region53: #{tpu_custom_call.1} parent=35 // pred_check
          %p336 = pneg %p317
        $region54: #{tpu_custom_call.1} parent=35 // pred_check_branch
          %338 = sbr.rel (%p336) target = $region56
        $region55: #{tpu_custom_call.1} parent=35 // pred_region
          %v339 = vld [vmem:[#allocation2] sm:$0x3]
          %vm340 = vcmask 1041408
          %v341 = vsel %vm340, %v339, 0.0
          %342 = vadd.xlane.f32.xlu0 %v341
          %v343 = vpop.xlane.xlu0 %342
          %v344 = vld [vmem:[#allocation3] sm:$0x3]
          %v345 = vld [vmem:[%s281] sm:$0x1]
          %v347 = vlaneseq
          %v348 = vshrl.u32 %v347, 7
          %v349 = vsub.s32 0, %v348
          %v350 = vrot.slane %v345, %v349
          %v352 = vmul.f32 %v343, %v350
          %v353 = vadd.f32 %v344, %v352
          %354 = vst [vmem:[#allocation3] sm:$0x3] %v353
        $region56: #{tpu_custom_call.1} parent=35 // pred_fallthru
          _
        %p355 = scmp.eq.s32.totalorder %s31, 3
        %p356 = pnand %p317, %p355
        %p357 = pneg %p356
        // Predicated region
        $region57: #{tpu_custom_call.1} parent=35 // pred_check
          _
        $region58: #{tpu_custom_call.1} parent=35 // pred_check_branch
          %359 = sbr.rel (%p356) target = $region60
        $region59: #{tpu_custom_call.1} parent=35 // pred_region
          %v360 = vld [vmem:[#allocation3] sm:$0x3]
          %v361 = vld [vmem:[%s2] sm:$0x1]
          %v363 = vlaneseq
          %v364 = vshrl.u32 %v363, 7
          %v365 = vsub.s32 0, %v364
          %v366 = vrot.slane %v361, %v365
          %v368 = vadd.f32 %v360, %v366
          %369 = vst [vmem:[#allocation9] sm:$0x3] %v368
          %v370 = vld [vmem:[%s316] sm:$0x3]
          %v371 = vsub.f32 %v368, %v370
          %v372 = vlaneseq
          %v373 = vshrl.u32 %v372, 7
          %s374 = smul.u32 %s30, 2
          %v375 = vstv %s374
          %v376 = vadd.s32 %v373, %v375
          %v377 = vlaneseq
          %v378 = vand.u32 %v377, 127
          %vm379 = vcmp.lt.s32.totalorder %v376, 2
          %vm380 = vcmp.lt.s32.totalorder %v378, 8
          %vm381 = vmand %vm379, %vm380
          %v382 = vmul.f32 %v371, %v371
          %v383 = vsel %vm381, %v382, 0.0
          %vm384 = vcmask 1041408
          %v385 = vsel %vm384, %v383, 0.0
          %386 = vadd.xlane.f32.xlu0 %v385
          %v387 = vpop.xlane.xlu0 %386
          %v388 = vrot.slane %v387, 4
          %v389 = vadd.f32 %v387, %v388
          %v390 = vrot.slane %v389, 2
          %v391 = vadd.f32 %v389, %v390
          %v392 = vrot.slane %v391, 1
          %v393 = vadd.f32 %v391, %v392
          %s394 = vtos %v393
          %v395 = vstv %s394
          %v396 = vadd.f32 %v395, 0.0
          %397 = vst [vmem:[#allocation10] sm:$0xff] %v396
        $region60: #{tpu_custom_call.1} parent=35 // pred_fallthru
          _
        // Predicated region
        $region61: #{tpu_custom_call.1} parent=35 // pred_check
          %p398 = pneg %p165
        $region62: #{tpu_custom_call.1} parent=35 // pred_check_branch
          %400 = sbr.rel (%p398) target = $region64
        $region63: #{tpu_custom_call.1} parent=35 // pred_region
          %s402 = ssub.s32 32, 32
          %403 = vsyncadd [#allocation6], %s402
          %s404 = smul.addr %s30, 32
          %s405 = scalar_lea.hbm %s4, %s404
          %s407 = sshll.u32 [#allocation9], 4
          %s408 = int_to_ptr.vmem [resolvable:$true] %s407
          %410 = dma.vmem_to_hbm [thread:$0]  %s408, 32, %s405, [#allocation6]
        $region64: #{tpu_custom_call.1} parent=35 // pred_fallthru
          _
        // Predicated region
        $region65: #{tpu_custom_call.1} parent=35 // pred_check
          %p411 = pneg %p191
        $region66: #{tpu_custom_call.1} parent=35 // pred_check_branch
          %413 = sbr.rel (%p411) target = $region68
        $region67: #{tpu_custom_call.1} parent=35 // pred_region
          %s415 = ssub.s32 128, 128
          %416 = vsyncadd [#allocation11], %s415
          %s417 = smul.addr %s30, 128
          %s418 = scalar_lea.hbm %s5, %s417
          %s420 = sshll.u32 [#allocation10], 4
          %s421 = int_to_ptr.vmem [resolvable:$true] %s420
          %423 = dma.vmem_to_hbm [thread:$0]  %s421, 128, %s418, [#allocation11]
        $region68: #{tpu_custom_call.1} parent=35 // pred_fallthru
          _
        // Predicated region
        $region69: #{tpu_custom_call.1} parent=35 // pred_check
          %p424 = pneg %p165
        $region70: #{tpu_custom_call.1} parent=35 // pred_check_branch
          %426 = sbr.rel (%p424) target = $region72
        $region71: #{tpu_custom_call.1} parent=35 // pred_region
          %427 = dma.done [#allocation6], 32
        $region72: #{tpu_custom_call.1} parent=35 // pred_fallthru
          _
        // Predicated region
        $region73: #{tpu_custom_call.1} parent=35 // pred_check
          %p428 = pneg %p191
        $region74: #{tpu_custom_call.1} parent=35 // pred_check_branch
          %430 = sbr.rel (%p428) target = $region76
        $region75: #{tpu_custom_call.1} parent=35 // pred_region
          %431 = dma.done [#allocation11], 128
        $region76: #{tpu_custom_call.1} parent=35 // pred_fallthru
          _
      $region36: #{tpu_custom_call.1} parent=5 // pred_fallthru
        _
      %p432 = scmp.le.s32.totalorder 2, %s20
      // Predicated region
      $region77: #{tpu_custom_call.1} parent=5 // pred_check
        %p433 = pneg %p432
      $region78: #{tpu_custom_call.1} parent=5 // pred_check_branch
        %435 = sbr.rel (%p433) target = $region80
      $region79: #{tpu_custom_call.1} parent=5 // pred_region
        %s436 = ssub.s32 %s20, 2
      $region80: #{tpu_custom_call.1} parent=5 // pred_fallthru
        _
    $region6: #{tpu_custom_call.1} parent=1 // loop_footer
      %s24 = sadd.s32 1, %s20
    $region7: #{tpu_custom_call.1} parent=1 // loop_footer_branch
      %19 = sbr.rel target = $region3
    $region8: #{tpu_custom_call.1} parent=1 // loop_exit
      _
    %437 = vsyncpa [#allocation5], 1
    %s438 = scalar_lea.sflag [#allocation5], 1
    %439 = vsyncpa %s438, 1
    %440 = vsyncpa [#allocation8], 1
    %s441 = scalar_lea.sflag [#allocation8], 1
    %442 = vsyncpa %s441, 1
    %443 = vsyncpa [#allocation6], 1
    %s444 = scalar_lea.sflag [#allocation6], 1
    %445 = vsyncpa %s444, 1
    %446 = vsyncpa [#allocation11], 1

</llo_original>
